<compile_context>
chip_gen: v5e
topology: v5e:2x2
jax: 0.10.0
libtpu: 0.0.40
codegen_flags: <defaults>
</compile_context>

<pallas_src>
import jax
import jax.numpy as jnp
from jax.experimental import pallas as pl
from jax.experimental.pallas import tpu as pltpu


def _round_up(n, m):
    return ((n + m - 1) // m) * m


def critic_kernel(x_ref, w1_ref, b1_ref, w2_ref, b2_ref, w3_ref, b3_ref, o_ref):
    # ---- fc1 (+ReLU) on the VPU: K=4 would be ~97% zero-padding on the MXU.
    x = x_ref[...]                                  # (TB, K_in)  f32
    w1 = w1_ref[...]                                # (K_in, H1)  f32
    k_in = w1.shape[0]                              # static (4)
    acc = x[:, 0:1] * w1[0:1, :]                    # (TB,1)*(1,H1) broadcast FMA
    for k in range(1, k_in):                        # static unroll
        acc = acc + x[:, k:k + 1] * w1[k:k + 1, :]
    h1 = jnp.maximum(acc + b1_ref[...], 0.0)        # f32 bias + ReLU

    # ---- fc2 (+ReLU) on the MXU: bf16 operands, f32 accumulation.
    h2 = jnp.dot(h1.astype(jnp.bfloat16), w2_ref[...],
                 preferred_element_type=jnp.float32)
    h2 = jnp.maximum(h2 + b2_ref[...], 0.0)         # f32 bias + ReLU

    # ---- fc3 (N=1) as VPU multiply + lane (XLU) reduction.
    out = jnp.sum(h2 * w3_ref[...], axis=-1, keepdims=True) + b3_ref[...]
    # TODO(synk): for batches in the many-thousands, a lane-dense (1, TB)
    # output layout would avoid masked vst.msk stores; kept (TB, 1) here to
    # preserve the module's output shape (negligible at these sizes).
    o_ref[...] = out.astype(o_ref.dtype)


def critic_forward(x, params, tb=256):
    """x: (B, input_size) float32. params: dict of w1,b1,w2,b2,w3,b3 (f32)."""
    w1, b1 = params["w1"], params["b1"]
    w2, b2 = params["w2"], params["b2"]
    w3, b3 = params["w3"], params["b3"]

    in_dim, h1_dim = w1.shape
    h2_dim, out_dim = w3.shape
    assert out_dim == 1

    # bf16 for the dominant (256x256) weight; everything else stays f32.
    w2_bf16 = w2.astype(jnp.bfloat16)
    w3_row = w3.T                                   # (1, H2) for VPU fc3

    # Batch tiling: pad B up to a multiple of the tile, grid over batch.
    B = x.shape[0]
    tb = min(tb, _round_up(B, 8))
    b_pad = _round_up(B, tb)
    if b_pad != B:
        x = jnp.pad(x, ((0, b_pad - B), (0, 0)))
    grid = (b_pad // tb,)

    flops = 2 * b_pad * (in_dim * h1_dim + h1_dim * h2_dim + h2_dim)
    bytes_accessed = (
        x.size * 4 + w1.size * 4 + b1.size * 4 + w2_bf16.size * 2
        + b2.size * 4 + w3_row.size * 4 + b3.size * 4 + b_pad * out_dim * 4
    )

    out = pl.pallas_call(
        critic_kernel,
        out_shape=jax.ShapeDtypeStruct((b_pad, out_dim), jnp.float32),
        grid=grid,
        in_specs=[
            pl.BlockSpec((tb, in_dim), lambda i: (i, 0)),       # x: tiled over batch
            pl.BlockSpec((in_dim, h1_dim), lambda i: (0, 0)),   # w1: resident
            pl.BlockSpec((1, h1_dim), lambda i: (0, 0)),        # b1: resident
            pl.BlockSpec((h1_dim, h2_dim), lambda i: (0, 0)),   # w2 (bf16): resident
            pl.BlockSpec((1, h2_dim), lambda i: (0, 0)),        # b2: resident
            pl.BlockSpec((1, h2_dim), lambda i: (0, 0)),        # w3 row: resident
            pl.BlockSpec((1, 1), lambda i: (0, 0)),             # b3: resident
        ],
        out_specs=pl.BlockSpec((tb, out_dim), lambda i: (i, 0)),
        compiler_params=pltpu.CompilerParams(
            dimension_semantics=("parallel",)),                 # v7x: shard over 2 TCs
        cost_estimate=pl.CostEstimate(
            flops=flops, transcendentals=0, bytes_accessed=bytes_accessed),
    )(x, w1, b1, w2_bf16, b2, w3_row, b3)

    return out[:B]


def init_params(key, input_size=4, hidden_size_1=256, hidden_size_2=256, output_size=1):
    """Deterministic init mimicking PyTorch nn.Linear default U(-1/sqrt(fan_in), 1/sqrt(fan_in))."""
    ks = jax.random.split(key, 6)

    def uniform(k, shape, fan_in):
        bound = 1.0 / jnp.sqrt(jnp.float32(fan_in))
        return jax.random.uniform(k, shape, jnp.float32, -bound, bound)

    return {
        "w1": uniform(ks[0], (input_size, hidden_size_1), input_size),
        "b1": uniform(ks[1], (1, hidden_size_1), input_size),
        "w2": uniform(ks[2], (hidden_size_1, hidden_size_2), hidden_size_1),
        "b2": uniform(ks[3], (1, hidden_size_2), hidden_size_1),
        "w3": uniform(ks[4], (hidden_size_2, output_size), hidden_size_2),
        "b3": uniform(ks[5], (1, output_size), hidden_size_2),
    }


def reference_forward(x, params):
    h1 = jnp.maximum(x @ params["w1"] + params["b1"], 0.0)
    h2 = jnp.maximum(h1 @ params["w2"] + params["b2"], 0.0)
    return h2 @ params["w3"] + params["b3"]


if __name__ == "__main__":
    key = jax.random.PRNGKey(0)
    k_param, k_obs = jax.random.split(key)

    input_size = 4
    params = init_params(k_param, input_size=input_size)

    # Small original-style batch and a larger, non-tile-multiple batch that
    # exercises the grid + padding path.
    for batch in (8, 500):
        obs = jax.random.normal(jax.random.fold_in(k_obs, batch),
                                (batch, input_size), jnp.float32)
        value = jax.block_until_ready(critic_forward(obs, params))
        ref = reference_forward(obs, params)
        assert value.shape == (batch, 1), value.shape
        # fc2 runs with bf16 operands (f32 accumulation); tolerance reflects that.
        assert jnp.allclose(value, ref, atol=1e-2, rtol=1e-2), (
            float(jnp.max(jnp.abs(value - ref))))

    print("KERNEL_OK")
</pallas_src>

<mosaic_0001>
module attributes {stable_mosaic.version = 11 : i64} {
  func.func @critic_kernel(%arg0: i32, %arg1: memref<8x4xf32, #tpu.memory_space<vmem>>, %arg2: memref<4x256xf32, #tpu.memory_space<vmem>>, %arg3: memref<1x256xf32, #tpu.memory_space<vmem>>, %arg4: memref<256x256xbf16, #tpu.memory_space<vmem>>, %arg5: memref<1x256xf32, #tpu.memory_space<vmem>>, %arg6: memref<1x256xf32, #tpu.memory_space<vmem>>, %arg7: memref<1x1xf32, #tpu.memory_space<vmem>>, %arg8: memref<8x1xf32, #tpu.memory_space<vmem>>) attributes {dimension_semantics = [#tpu.dimension_semantics<parallel>], iteration_bounds = array<i64: 1>, scalar_prefetch = 0 : i64, scratch_operands = 0 : i64, tpu.core_type = #tpu.core_type<tc>, window_params = [{transform_indices = @transform_0, window_bounds = array<i64: 8, 4>}, {pipeline_mode = #tpu.pipeline_mode<synchronous>, transform_indices = @transform_1, window_bounds = array<i64: 4, 256>}, {pipeline_mode = #tpu.pipeline_mode<synchronous>, transform_indices = @transform_2, window_bounds = array<i64: 1, 256>}, {pipeline_mode = #tpu.pipeline_mode<synchronous>, transform_indices = @transform_3, window_bounds = array<i64: 256, 256>}, {pipeline_mode = #tpu.pipeline_mode<synchronous>, transform_indices = @transform_4, window_bounds = array<i64: 1, 256>}, {pipeline_mode = #tpu.pipeline_mode<synchronous>, transform_indices = @transform_5, window_bounds = array<i64: 1, 256>}, {pipeline_mode = #tpu.pipeline_mode<synchronous>, transform_indices = @transform_6, window_bounds = array<i64: 1, 1>}, {transform_indices = @transform_7, window_bounds = array<i64: 8, 1>}]} {
    %c0 = arith.constant 0 : index
    %c0_0 = arith.constant 0 : index
    %0 = vector.load %arg1[%c0, %c0_0] : memref<8x4xf32, #tpu.memory_space<vmem>>, vector<8x4xf32>
    %c0_1 = arith.constant 0 : index
    %c0_2 = arith.constant 0 : index
    %1 = vector.load %arg2[%c0_1, %c0_2] : memref<4x256xf32, #tpu.memory_space<vmem>>, vector<4x256xf32>
    %2 = vector.extract_strided_slice %0 {offsets = [0, 0], sizes = [8, 1], strides = [1, 1]} : vector<8x4xf32> to vector<8x1xf32>
    %3 = vector.extract_strided_slice %1 {offsets = [0, 0], sizes = [1, 256], strides = [1, 1]} : vector<4x256xf32> to vector<1x256xf32>
    %4 = vector.broadcast %2 : vector<8x1xf32> to vector<8x256xf32>
    %5 = vector.broadcast %3 : vector<1x256xf32> to vector<8x256xf32>
    %6 = arith.mulf %4, %5 : vector<8x256xf32>
    %7 = vector.extract_strided_slice %0 {offsets = [0, 1], sizes = [8, 1], strides = [1, 1]} : vector<8x4xf32> to vector<8x1xf32>
    %8 = vector.extract_strided_slice %1 {offsets = [1, 0], sizes = [1, 256], strides = [1, 1]} : vector<4x256xf32> to vector<1x256xf32>
    %9 = vector.broadcast %7 : vector<8x1xf32> to vector<8x256xf32>
    %10 = vector.broadcast %8 : vector<1x256xf32> to vector<8x256xf32>
    %11 = arith.mulf %9, %10 : vector<8x256xf32>
    %12 = arith.addf %6, %11 : vector<8x256xf32>
    %13 = vector.extract_strided_slice %0 {offsets = [0, 2], sizes = [8, 1], strides = [1, 1]} : vector<8x4xf32> to vector<8x1xf32>
    %14 = vector.extract_strided_slice %1 {offsets = [2, 0], sizes = [1, 256], strides = [1, 1]} : vector<4x256xf32> to vector<1x256xf32>
    %15 = vector.broadcast %13 : vector<8x1xf32> to vector<8x256xf32>
    %16 = vector.broadcast %14 : vector<1x256xf32> to vector<8x256xf32>
    %17 = arith.mulf %15, %16 : vector<8x256xf32>
    %18 = arith.addf %12, %17 : vector<8x256xf32>
    %19 = vector.extract_strided_slice %0 {offsets = [0, 3], sizes = [8, 1], strides = [1, 1]} : vector<8x4xf32> to vector<8x1xf32>
    %20 = vector.extract_strided_slice %1 {offsets = [3, 0], sizes = [1, 256], strides = [1, 1]} : vector<4x256xf32> to vector<1x256xf32>
    %21 = vector.broadcast %19 : vector<8x1xf32> to vector<8x256xf32>
    %22 = vector.broadcast %20 : vector<1x256xf32> to vector<8x256xf32>
    %23 = arith.mulf %21, %22 : vector<8x256xf32>
    %24 = arith.addf %18, %23 : vector<8x256xf32>
    %c0_3 = arith.constant 0 : index
    %c0_4 = arith.constant 0 : index
    %25 = vector.load %arg3[%c0_3, %c0_4] : memref<1x256xf32, #tpu.memory_space<vmem>>, vector<1x256xf32>
    %26 = vector.broadcast %25 : vector<1x256xf32> to vector<8x256xf32>
    %27 = arith.addf %24, %26 : vector<8x256xf32>
    %cst = arith.constant 0.000000e+00 : f32
    %28 = vector.broadcast %cst : f32 to vector<8x256xf32>
    %29 = arith.maximumf %27, %28 : vector<8x256xf32>
    %30 = arith.truncf %29 : vector<8x256xf32> to vector<8x256xbf16>
    %c0_5 = arith.constant 0 : index
    %c0_6 = arith.constant 0 : index
    %31 = vector.load %arg4[%c0_5, %c0_6] : memref<256x256xbf16, #tpu.memory_space<vmem>>, vector<256x256xbf16>
    %cst_7 = arith.constant dense<0.000000e+00> : vector<8x256xf32>
    %32 = tpu.matmul %30, %31, %cst_7 {dimension_numbers = #tpu.dot_dimension_numbers<[1], [0], [0], [1], [0, 0, 1, 1], [], []>} : vector<8x256xbf16>, vector<256x256xbf16>, vector<8x256xf32> -> vector<8x256xf32>
    %c0_8 = arith.constant 0 : index
    %c0_9 = arith.constant 0 : index
    %33 = vector.load %arg5[%c0_8, %c0_9] : memref<1x256xf32, #tpu.memory_space<vmem>>, vector<1x256xf32>
    %34 = vector.broadcast %33 : vector<1x256xf32> to vector<8x256xf32>
    %35 = arith.addf %32, %34 : vector<8x256xf32>
    %cst_10 = arith.constant 0.000000e+00 : f32
    %36 = vector.broadcast %cst_10 : f32 to vector<8x256xf32>
    %37 = arith.maximumf %35, %36 : vector<8x256xf32>
    %c0_11 = arith.constant 0 : index
    %c0_12 = arith.constant 0 : index
    %38 = vector.load %arg6[%c0_11, %c0_12] : memref<1x256xf32, #tpu.memory_space<vmem>>, vector<1x256xf32>
    %39 = vector.broadcast %38 : vector<1x256xf32> to vector<8x256xf32>
    %40 = arith.mulf %37, %39 : vector<8x256xf32>
    %cst_13 = arith.constant dense<0.000000e+00> : vector<8xf32>
    %41 = vector.multi_reduction <add>, %40, %cst_13 [1] : vector<8x256xf32> to vector<8xf32>
    %42 = vector.shape_cast %41 : vector<8xf32> to vector<8x1xf32>
    %c0_14 = arith.constant 0 : index
    %c0_15 = arith.constant 0 : index
    %43 = vector.load %arg7[%c0_14, %c0_15] : memref<1x1xf32, #tpu.memory_space<vmem>>, vector<1x1xf32>
    %44 = vector.broadcast %43 : vector<1x1xf32> to vector<8x1xf32>
    %45 = arith.addf %42, %44 : vector<8x1xf32>
    %c0_16 = arith.constant 0 : index
    %c0_17 = arith.constant 0 : index
    %46 = vector.load %arg8[%c0_16, %c0_17] : memref<8x1xf32, #tpu.memory_space<vmem>>, vector<8x1xf32>
    tpu.vector_store %arg8[%c0_16, %c0_17], %45 {strides = array<i32>} : memref<8x1xf32, #tpu.memory_space<vmem>>, vector<8x1xf32>,
    return
  }
  func.func @transform_0(%arg0: i32) -> (i32, i32) {
    %c0_i32 = arith.constant 0 : i32
    %c0_i32_0 = arith.constant 0 : i32
    return %arg0, %c0_i32 : i32, i32
  }
  func.func @transform_1(%arg0: i32) -> (i32, i32) {
    %c0_i32 = arith.constant 0 : i32
    %c0_i32_0 = arith.constant 0 : i32
    %c0_i32_1 = arith.constant 0 : i32
    return %c0_i32, %c0_i32_0 : i32, i32
  }
  func.func @transform_2(%arg0: i32) -> (i32, i32) {
    %c0_i32 = arith.constant 0 : i32
    %c0_i32_0 = arith.constant 0 : i32
    %c0_i32_1 = arith.constant 0 : i32
    return %c0_i32, %c0_i32_0 : i32, i32
  }
  func.func @transform_3(%arg0: i32) -> (i32, i32) {
    %c0_i32 = arith.constant 0 : i32
    %c0_i32_0 = arith.constant 0 : i32
    %c0_i32_1 = arith.constant 0 : i32
    return %c0_i32, %c0_i32_0 : i32, i32
  }
  func.func @transform_4(%arg0: i32) -> (i32, i32) {
    %c0_i32 = arith.constant 0 : i32
    %c0_i32_0 = arith.constant 0 : i32
    %c0_i32_1 = arith.constant 0 : i32
    return %c0_i32, %c0_i32_0 : i32, i32
  }
  func.func @transform_5(%arg0: i32) -> (i32, i32) {
    %c0_i32 = arith.constant 0 : i32
    %c0_i32_0 = arith.constant 0 : i32
    %c0_i32_1 = arith.constant 0 : i32
    return %c0_i32, %c0_i32_0 : i32, i32
  }
  func.func @transform_6(%arg0: i32) -> (i32, i32) {
    %c0_i32 = arith.constant 0 : i32
    %c0_i32_0 = arith.constant 0 : i32
    %c0_i32_1 = arith.constant 0 : i32
    return %c0_i32, %c0_i32_0 : i32, i32
  }
  func.func @transform_7(%arg0: i32) -> (i32, i32) {
    %c0_i32 = arith.constant 0 : i32
    %c0_i32_0 = arith.constant 0 : i32
    return %arg0, %c0_i32 : i32, i32
  }
}

</mosaic_0001>

<llo_original>
// kernel: tpu_custom_call.1
$region0: #{tpu_custom_call.1}
  #allocation0 [shape = 'u32[]', space=smem, size = 0x4, offset = 0x4, fixed_abs, tag = 'smem constant byte address 0x4 - core index']
  #allocation1 [shape = 'u32[72,128]{1,0:T(1,128)}', space=vmem, size = 0x9000, scoped, tag = 'internal scratch']
  #allocation2 [shape = 'f32[1,1]{1,0:T(1,128)S(1)}', space=vmem, size = 0x200, scoped, tag = 'scoped memory for tpu_custom_call.1']
  %s0 = inlined_call_operand.vmem [shape: f32[8,4], index: 0, kind: input, shape index: {}]
  %s1 = inlined_call_operand.vmem [shape: f32[4,256], index: 1, kind: input, shape index: {}]
  %s2 = inlined_call_operand.vmem [shape: f32[1,256], index: 2, kind: input, shape index: {}]
  %s3 = inlined_call_operand.hbm [shape: bf16[256,256], index: 3, kind: input, shape index: {}]
  %s4 = inlined_call_operand.vmem [shape: f32[1,256], index: 4, kind: input, shape index: {}]
  %s5 = inlined_call_operand.vmem [shape: f32[1,256], index: 5, kind: input, shape index: {}]
  %s6 = inlined_call_operand.<no memory space> [shape: f32[1,1], index: 6, kind: input, shape index: {}]
  %s7 = inlined_call_operand.vmem [shape: f32[8,1], index: 7, kind: output, shape index: {}]
  %s8 = sld [smem:[#allocation0]]
  $region42: #{tpu_custom_call.1} parent=0
    _
  %s10 = ssub.s32 1, %s8
  %s11 = scalar_select 0, %s10, %s8
  %v12 = vstv %s6
  %13 = vst [vmem:[#allocation2] sm:$0x1] %v12
  $region1: #{tpu_custom_call.1} parent=0
    #allocation3 [shape = 'u8[131072]{0}', space=vmem, size = 0x20000, scoped, tag = 'input window, operand 3, single buffered']
    #allocation4 [shape = 's32[1]{0}', space=sflag, size = 0x4, scoped, tag = 'scoped memory for tpu_custom_call.1']
    %14 = vsyncpa [#allocation4], 0
    // Predicated region
    $region2: #{tpu_custom_call.1} parent=1 // pred_check
      _
    $region3: #{tpu_custom_call.1} parent=1 // pred_check_branch
      %16 = sbr.rel (0) target = $region5
    $region4: #{tpu_custom_call.1} parent=1 // pred_region
      _
    $region5: #{tpu_custom_call.1} parent=1 // pred_fallthru
      _
    // Predicated region
    $region6: #{tpu_custom_call.1} parent=1 // pred_check
      _
    $region7: #{tpu_custom_call.1} parent=1 // pred_check_branch
      %18 = sbr.rel (0) target = $region9
    $region8: #{tpu_custom_call.1} parent=1 // pred_region
      _
    $region9: #{tpu_custom_call.1} parent=1 // pred_fallthru
      _
    // Predicated region
    $region10: #{tpu_custom_call.1} parent=1 // pred_check
      _
    $region11: #{tpu_custom_call.1} parent=1 // pred_check_branch
      %20 = sbr.rel (0) target = $region13
    $region12: #{tpu_custom_call.1} parent=1 // pred_region
      _
    $region13: #{tpu_custom_call.1} parent=1 // pred_fallthru
      _
    // Predicated region
    $region14: #{tpu_custom_call.1} parent=1 // pred_check
      _
    $region15: #{tpu_custom_call.1} parent=1 // pred_check_branch
      %22 = sbr.rel (0) target = $region17
    $region16: #{tpu_custom_call.1} parent=1 // pred_region
      %24 = vsyncadd [#allocation4], 0
      %s25 = sshll.u32 %s3, 4
      %s26 = int_to_ptr.hbm [resolvable:$true] %s25
      %s27 = sshll.u32 [#allocation3], 4
      %s28 = int_to_ptr.vmem [resolvable:$true] %s27
      %33 = dma.hbm_to_vmem [thread:$0]  %s26, 4096, %s28, [#allocation4], 128, 128, 8
    $region17: #{tpu_custom_call.1} parent=1 // pred_fallthru
      _
    // Predicated region
    $region18: #{tpu_custom_call.1} parent=1 // pred_check
      _
    $region19: #{tpu_custom_call.1} parent=1 // pred_check_branch
      %35 = sbr.rel (0) target = $region21
    $region20: #{tpu_custom_call.1} parent=1 // pred_region
      _
    $region21: #{tpu_custom_call.1} parent=1 // pred_fallthru
      _
    // Predicated region
    $region22: #{tpu_custom_call.1} parent=1 // pred_check
      _
    $region23: #{tpu_custom_call.1} parent=1 // pred_check_branch
      %37 = sbr.rel (0) target = $region25
    $region24: #{tpu_custom_call.1} parent=1 // pred_region
      _
    $region25: #{tpu_custom_call.1} parent=1 // pred_fallthru
      _
    // Predicated region
    $region26: #{tpu_custom_call.1} parent=1 // pred_check
      _
    $region27: #{tpu_custom_call.1} parent=1 // pred_check_branch
      %39 = sbr.rel (0) target = $region29
    $region28: #{tpu_custom_call.1} parent=1 // pred_region
      _
    $region29: #{tpu_custom_call.1} parent=1 // pred_fallthru
      _
    // Predicated region
    $region30: #{tpu_custom_call.1} parent=1 // pred_check
      _
    $region31: #{tpu_custom_call.1} parent=1 // pred_check_branch
      %41 = sbr.rel (0) target = $region33
    $region32: #{tpu_custom_call.1} parent=1 // pred_region
      %43 = dma.done [#allocation4], 4096
    $region33: #{tpu_custom_call.1} parent=1 // pred_fallthru
      _
    %v44 = vld [vmem:[%s0] sm:$0xff]
    %v45 = vld [vmem:[%s1] sm:$0xff]
    %47 = vset.pattern.permute.xlu0 0
    %48 = vperm.xlu0 %47, %v44
    %v49 = vpop.permute.xlu0 %48
    %v52 = vperm.slane %v45, 0
    %v53 = vperm.slane %v45, 4
    %v56 = vperm.slane %v52, 0
    %v57 = vperm.slane %v53, 0
    %v58 = vmul.f32 %v49, %v56
    %v59 = vmul.f32 %v49, %v57
    %60 = vset.pattern.permute.xlu0 1
    %61 = vperm.xlu0 %60, %v44
    %v62 = vpop.permute.xlu0 %61
    %v64 = vperm.slane %v45, 1
    %v65 = vperm.slane %v45, 5
    %v68 = vperm.slane %v64, 1
    %v69 = vperm.slane %v65, 1
    %v70 = vmul.f32 %v62, %v68
    %v71 = vmul.f32 %v62, %v69
    %v72 = vadd.f32 %v58, %v70
    %v73 = vadd.f32 %v59, %v71
    %74 = vset.pattern.permute.xlu0 2
    %75 = vperm.xlu0 %74, %v44
    %v76 = vpop.permute.xlu0 %75
    %v78 = vperm.slane %v45, 2
    %v79 = vperm.slane %v45, 6
    %v82 = vperm.slane %v78, 2
    %v83 = vperm.slane %v79, 2
    %v84 = vmul.f32 %v76, %v82
    %v85 = vmul.f32 %v76, %v83
    %v86 = vadd.f32 %v72, %v84
    %v87 = vadd.f32 %v73, %v85
    %88 = vset.pattern.permute.xlu0 3
    %89 = vperm.xlu0 %88, %v44
    %v90 = vpop.permute.xlu0 %89
    %v92 = vperm.slane %v45, 3
    %v93 = vperm.slane %v45, 7
    %v96 = vperm.slane %v92, 3
    %v97 = vperm.slane %v93, 3
    %v98 = vmul.f32 %v90, %v96
    %v99 = vmul.f32 %v90, %v97
    %v100 = vadd.f32 %v86, %v98
    %v101 = vadd.f32 %v87, %v99
    %v102 = vld [vmem:[%s2] sm:$0x3]
    %v104 = vperm.slane %v102, 0
    %v105 = vperm.slane %v102, 1
    %v108 = vadd.f32 %v100, %v104
    %v109 = vadd.f32 %v101, %v105
    %v110 = vmax.f32 %v108, 0.0
    %v111 = vmax.f32 %v109, 0.0
    %v112 = vpack.c.bf16 %v110, %v110
    %v113 = vpack.c.bf16 %v111, %v111
    %v114 = vld [vmem:[#allocation3] sm:$0xff]
    %v115 = vld [vmem:[#allocation3 + $0x8] sm:$0xff]
    %v116 = vld [vmem:[#allocation3 + $0x10] sm:$0xff]
    %v117 = vld [vmem:[#allocation3 + $0x18] sm:$0xff]
    %v118 = vld [vmem:[#allocation3 + $0x20] sm:$0xff]
    %v119 = vld [vmem:[#allocation3 + $0x28] sm:$0xff]
    %v120 = vld [vmem:[#allocation3 + $0x30] sm:$0xff]
    %v121 = vld [vmem:[#allocation3 + $0x38] sm:$0xff]
    %v122 = vld [vmem:[#allocation3 + $0x40] sm:$0xff]
    %v123 = vld [vmem:[#allocation3 + $0x48] sm:$0xff]
    %v124 = vld [vmem:[#allocation3 + $0x50] sm:$0xff]
    %v125 = vld [vmem:[#allocation3 + $0x58] sm:$0xff]
    %v126 = vld [vmem:[#allocation3 + $0x60] sm:$0xff]
    %v127 = vld [vmem:[#allocation3 + $0x68] sm:$0xff]
    %v128 = vld [vmem:[#allocation3 + $0x70] sm:$0xff]
    %v129 = vld [vmem:[#allocation3 + $0x78] sm:$0xff]
    %v130 = vld [vmem:[#allocation3 + $0x80] sm:$0xff]
    %v131 = vld [vmem:[#allocation3 + $0x88] sm:$0xff]
    %v132 = vld [vmem:[#allocation3 + $0x90] sm:$0xff]
    %v133 = vld [vmem:[#allocation3 + $0x98] sm:$0xff]
    %v134 = vld [vmem:[#allocation3 + $0xa0] sm:$0xff]
    %v135 = vld [vmem:[#allocation3 + $0xa8] sm:$0xff]
    %v136 = vld [vmem:[#allocation3 + $0xb0] sm:$0xff]
    %v137 = vld [vmem:[#allocation3 + $0xb8] sm:$0xff]
    %v138 = vld [vmem:[#allocation3 + $0xc0] sm:$0xff]
    %v139 = vld [vmem:[#allocation3 + $0xc8] sm:$0xff]
    %v140 = vld [vmem:[#allocation3 + $0xd0] sm:$0xff]
    %v141 = vld [vmem:[#allocation3 + $0xd8] sm:$0xff]
    %v142 = vld [vmem:[#allocation3 + $0xe0] sm:$0xff]
    %v143 = vld [vmem:[#allocation3 + $0xe8] sm:$0xff]
    %v144 = vld [vmem:[#allocation3 + $0xf0] sm:$0xff]
    %v145 = vld [vmem:[#allocation3 + $0xf8] sm:$0xff]
    %v146 = vld [vmem:[%s4] sm:$0x3]
    %v148 = vperm.slane %v146, 0
    %v149 = vperm.slane %v146, 1
    %v184 = vunpack.c.l.b16 %v114
    %v185 = vunpack.c.h.b16 %v114
    %v186 = vunpack.c.l.b16 %v115
    %v187 = vunpack.c.h.b16 %v115
    %v188 = vunpack.c.l.b16 %v116
    %v189 = vunpack.c.h.b16 %v116
    %v190 = vunpack.c.l.b16 %v117
    %v191 = vunpack.c.h.b16 %v117
    %v192 = vunpack.c.l.b16 %v118
    %v193 = vunpack.c.h.b16 %v118
    %v194 = vunpack.c.l.b16 %v119
    %v195 = vunpack.c.h.b16 %v119
    %v196 = vunpack.c.l.b16 %v120
    %v197 = vunpack.c.h.b16 %v120
    %v198 = vunpack.c.l.b16 %v121
    %v199 = vunpack.c.h.b16 %v121
    %v200 = vunpack.c.l.b16 %v122
    %v201 = vunpack.c.h.b16 %v122
    %v202 = vunpack.c.l.b16 %v123
    %v203 = vunpack.c.h.b16 %v123
    %v204 = vunpack.c.l.b16 %v124
    %v205 = vunpack.c.h.b16 %v124
    %v206 = vunpack.c.l.b16 %v125
    %v207 = vunpack.c.h.b16 %v125
    %v208 = vunpack.c.l.b16 %v126
    %v209 = vunpack.c.h.b16 %v126
    %v210 = vunpack.c.l.b16 %v127
    %v211 = vunpack.c.h.b16 %v127
    %v212 = vunpack.c.l.b16 %v128
    %v213 = vunpack.c.h.b16 %v128
    %v214 = vunpack.c.l.b16 %v129
    %v215 = vunpack.c.h.b16 %v129
    %v216 = vunpack.c.l.b16 %v130
    %v217 = vunpack.c.h.b16 %v130
    %v218 = vunpack.c.l.b16 %v131
    %v219 = vunpack.c.h.b16 %v131
    %v220 = vunpack.c.l.b16 %v132
    %v221 = vunpack.c.h.b16 %v132
    %v222 = vunpack.c.l.b16 %v133
    %v223 = vunpack.c.h.b16 %v133
    %v224 = vunpack.c.l.b16 %v134
    %v225 = vunpack.c.h.b16 %v134
    %v226 = vunpack.c.l.b16 %v135
    %v227 = vunpack.c.h.b16 %v135
    %v228 = vunpack.c.l.b16 %v136
    %v229 = vunpack.c.h.b16 %v136
    %v230 = vunpack.c.l.b16 %v137
    %v231 = vunpack.c.h.b16 %v137
    %v232 = vunpack.c.l.b16 %v138
    %v233 = vunpack.c.h.b16 %v138
    %v234 = vunpack.c.l.b16 %v139
    %v235 = vunpack.c.h.b16 %v139
    %v236 = vunpack.c.l.b16 %v140
    %v237 = vunpack.c.h.b16 %v140
    %v238 = vunpack.c.l.b16 %v141
    %v239 = vunpack.c.h.b16 %v141
    %v240 = vunpack.c.l.b16 %v142
    %v241 = vunpack.c.h.b16 %v142
    %v242 = vunpack.c.l.b16 %v143
    %v243 = vunpack.c.h.b16 %v143
    %v244 = vunpack.c.l.b16 %v144
    %v245 = vunpack.c.h.b16 %v144
    %v246 = vunpack.c.l.b16 %v145
    %v247 = vunpack.c.h.b16 %v145
    %v248 = vpack.c.b16 %v186, %v184
    %v249 = vpack.c.b16 %v187, %v185
    %v250 = vpack.c.b16 %v190, %v188
    %v251 = vpack.c.b16 %v191, %v189
    %v252 = vpack.c.b16 %v194, %v192
    %v253 = vpack.c.b16 %v195, %v193
    %v254 = vpack.c.b16 %v198, %v196
    %v255 = vpack.c.b16 %v199, %v197
    %v256 = vpack.c.b16 %v202, %v200
    %v257 = vpack.c.b16 %v203, %v201
    %v258 = vpack.c.b16 %v206, %v204
    %v259 = vpack.c.b16 %v207, %v205
    %v260 = vpack.c.b16 %v210, %v208
    %v261 = vpack.c.b16 %v211, %v209
    %v262 = vpack.c.b16 %v214, %v212
    %v263 = vpack.c.b16 %v215, %v213
    %v264 = vpack.c.b16 %v218, %v216
    %v265 = vpack.c.b16 %v219, %v217
    %v266 = vpack.c.b16 %v222, %v220
    %v267 = vpack.c.b16 %v223, %v221
    %v268 = vpack.c.b16 %v226, %v224
    %v269 = vpack.c.b16 %v227, %v225
    %v270 = vpack.c.b16 %v230, %v228
    %v271 = vpack.c.b16 %v231, %v229
    %v272 = vpack.c.b16 %v234, %v232
    %v273 = vpack.c.b16 %v235, %v233
    %v274 = vpack.c.b16 %v238, %v236
    %v275 = vpack.c.b16 %v239, %v237
    %v276 = vpack.c.b16 %v242, %v240
    %v277 = vpack.c.b16 %v243, %v241
    %v278 = vpack.c.b16 %v246, %v244
    %v279 = vpack.c.b16 %v247, %v245
    %312 = vmatpush.bf16.msra.mxu0 %v262
    %313 = vmatpush.bf16.msra.mxu0 %v260
    %314 = vmatpush.bf16.msra.mxu0 %v258
    %315 = vmatpush.bf16.msra.mxu0 %v256
    %316 = vmatpush.bf16.msra.mxu0 %v254
    %317 = vmatpush.bf16.msra.mxu0 %v252
    %318 = vmatpush.bf16.msra.mxu0 %v250
    %319 = vmatpush.bf16.msra.mxu0 %v248
    %320 = vmatmul.bf16.gmra.mxu0 %v112
    %v321 = vpop.f32.mrf.mxu0
    %v322 = vadd.f32 %v148, %v321
    %v323 = vpop.f32.mrf.mxu0
    %324 = vdwg.mxu0
    %325 = vmatpush.bf16.msra.mxu0 %v278
    %326 = vmatpush.bf16.msra.mxu0 %v276
    %327 = vmatpush.bf16.msra.mxu0 %v274
    %328 = vmatpush.bf16.msra.mxu0 %v272
    %329 = vmatpush.bf16.msra.mxu0 %v270
    %330 = vmatpush.bf16.msra.mxu0 %v268
    %331 = vmatpush.bf16.msra.mxu0 %v266
    %332 = vmatpush.bf16.msra.mxu0 %v264
    %333 = vmatmul.bf16.gmra.mxu0 %v113
    %v334 = vpop.f32.mrf.mxu0
    %v335 = vadd.f32 %v322, %v334
    %v336 = vpop.f32.mrf.mxu0
    %337 = vdwg.mxu0
    %338 = vmatpush.bf16.msra.mxu0 %v263
    %339 = vmatpush.bf16.msra.mxu0 %v261
    %340 = vmatpush.bf16.msra.mxu0 %v259
    %341 = vmatpush.bf16.msra.mxu0 %v257
    %342 = vmatpush.bf16.msra.mxu0 %v255
    %343 = vmatpush.bf16.msra.mxu0 %v253
    %344 = vmatpush.bf16.msra.mxu0 %v251
    %345 = vmatpush.bf16.msra.mxu0 %v249
    %346 = vmatmul.bf16.gmra.mxu0 %v112
    %v347 = vpop.f32.mrf.mxu0
    %v348 = vadd.f32 %v149, %v347
    %v349 = vpop.f32.mrf.mxu0
    %350 = vdwg.mxu0
    %351 = vmatpush.bf16.msra.mxu0 %v279
    %352 = vmatpush.bf16.msra.mxu0 %v277
    %353 = vmatpush.bf16.msra.mxu0 %v275
    %354 = vmatpush.bf16.msra.mxu0 %v273
    %355 = vmatpush.bf16.msra.mxu0 %v271
    %356 = vmatpush.bf16.msra.mxu0 %v269
    %357 = vmatpush.bf16.msra.mxu0 %v267
    %358 = vmatpush.bf16.msra.mxu0 %v265
    %359 = vmatmul.bf16.gmra.mxu0 %v113
    %v360 = vpop.f32.mrf.mxu0
    %v361 = vadd.f32 %v348, %v360
    %v362 = vpop.f32.mrf.mxu0
    %363 = vdwg.mxu0
    %v364 = vmax.f32 %v335, 0.0
    %v365 = vmax.f32 %v361, 0.0
    %v366 = vld [vmem:[%s5] sm:$0x3]
    %v368 = vperm.slane %v366, 0
    %v369 = vperm.slane %v366, 1
    %v372 = vmul.f32 %v364, %v368
    %v373 = vmul.f32 %v365, %v369
    %v374 = vadd.f32 %v372, %v373
    %375 = vadd.xlane.f32.xlu0 %v374
    %v376 = vpop.xlane.xlu0 %375
    %v377 = vld [vmem:[#allocation2] sm:$0x1]
    %v379 = vperm.slane %v377, 0
    %v381 = vadd.f32 %v376, %v379
    %vm382 = vcmask 7168
    %383 = vst.msk [vmem:[%s7] sm:$0xff] %vm382, %v381
    // Predicated region
    $region34: #{tpu_custom_call.1} parent=1 // pred_check
      _
    $region35: #{tpu_custom_call.1} parent=1 // pred_check_branch
      %385 = sbr.rel (0) target = $region37
    $region36: #{tpu_custom_call.1} parent=1 // pred_region
      _
    $region37: #{tpu_custom_call.1} parent=1 // pred_fallthru
      _
    // Predicated region
    $region38: #{tpu_custom_call.1} parent=1 // pred_check
      _
    $region39: #{tpu_custom_call.1} parent=1 // pred_check_branch
      %387 = sbr.rel (0) target = $region41
    $region40: #{tpu_custom_call.1} parent=1 // pred_region
      _
    $region41: #{tpu_custom_call.1} parent=1 // pred_fallthru
      _
    %388 = vsyncpa [#allocation4], 1

</llo_original>
